<compile_context>
chip_gen: v7x
topology: tpu7x:2x2x1
jax: 0.10.0
libtpu: 0.0.40
codegen_flags: <defaults>
</compile_context>

<pallas_src>
import functools

import jax
import jax.numpy as jnp
import numpy as np
from jax import lax
from jax.experimental import pallas as pl
from jax.experimental.pallas import tpu as pltpu


def _cdiv(a, b):
    return -(-a // b)


def _unpool_kernel(x_ref, o_ref, *, w, stride, g, kb):
    """One row-block: zero-fill the whole lane-dense output block, then
    overwrite the di==0 sub-rows with the column-dilated input chunks."""
    s = stride

    # 1) Every zero of the dilated output comes from a single dense, unmasked,
    #    full-width store (pure vst work; no MXU, no cast pass).
    o_ref[...] = jnp.zeros_like(o_ref)

    # 2) Tiny constant one-hot spread matrix (kb -> kb*s): sel[j, j*s] = 1.
    #    Built once per step from iotas (nothing to DMA / double-buffer).
    #    Exact: 1.0 * x with f32 accumulation, for f32 and bf16 inputs alike.
    # TODO(synk): replace this tiny spread-matmul with a pure XLU lane gather
    # (jnp.take_along_axis) once that lowering is verified on all target gens.
    ri = lax.broadcasted_iota(jnp.int32, (kb, kb * s), 0)
    ci = lax.broadcasted_iota(jnp.int32, (kb, kb * s), 1)
    sel = (ci == ri * s).astype(x_ref.dtype)

    n_chunks = w // kb
    for ii in range(g):                 # row-group member (small static unroll)
        for a in range(n_chunks):       # column chunk of width kb
            xa = x_ref[:, ii * w + a * kb: ii * w + (a + 1) * kb]
            ya = jnp.dot(xa, sel, preferred_element_type=jnp.float32)
            off = ii * (s * s * w) + a * kb * s
            o_ref[:, off: off + kb * s] = ya.astype(o_ref.dtype)


def _pick_group(total_rows, w, stride, *, itemsize, max_width=4096, max_g=32):
    """Row-group g: fold g input rows into one super-row so the output
    super-row width g*s*s*W is a multiple of 128 lanes (dense stores, long
    DMA chunks on the store-bound output path)."""
    base = stride * stride * w
    g_out = 0
    for g in range(1, max_g + 1):
        if total_rows % g == 0 and (g * base) % 128 == 0 and g * w <= max_width:
            g_out = g
            break
    if g_out == 0:
        return 1  # correct fallback: masked stores on narrow rows
    align = {4: 8, 2: 16, 1: 32}.get(itemsize, 8)
    # Second-order: also make the *input* rows lane-dense (g*W % 128 == 0) if
    # that still leaves enough row-blocks to feed several grid steps.
    for g in range(g_out, max_g + 1, g_out):
        if (total_rows % g == 0 and (g * w) % 128 == 0 and g * w <= max_width
                and total_rows // g >= 8 * align):
            return g
    return g_out


def _pick_chunk(w):
    """Column-dilation chunk width kb (divisor of W, kept <= 64 so the spread
    costs <= kb/s MACs per nonzero output element on every generation)."""
    if w <= 64:
        return w
    for kb in range(64, 7, -1):
        if w % kb == 0:
            return kb
    return w  # rare (large prime-ish W): accept K = W


def _pick_rows_per_block(nrows, out_row_bytes, itemsize, target_bytes=8 << 20):
    """Rows per grid step: ~8 MiB output blocks (amortise per-step pipeline
    overhead, still < 1/4 of v7x's 64 MiB VMEM when double-buffered), >= 4 and
    even grid steps when the problem allows (2 steps per v7x TensorCore), and
    sublane-pack alignment (8 rows f32 / 16 rows bf16)."""
    align = {4: 8, 2: 16, 1: 32}.get(itemsize, 8)
    steps = max(1, _cdiv(nrows * out_row_bytes, target_bytes))
    if nrows >= 4 * align:
        steps = max(steps, 4)
    if steps > 1 and steps % 2:
        steps += 1
    br = _cdiv(nrows, steps)
    return max(align, _cdiv(br, align) * align)


def unpool(x: jax.Array, stride: int = 2) -> jax.Array:
    """Pallas implementation of Unpool.forward (NCHW in, NCHW out)."""
    if not jnp.issubdtype(x.dtype, jnp.floating):
        # TODO(synk): integer inputs would need an integer store path; the
        # PyTorch module only ever sees floats.
        raise NotImplementedError("unpool: floating-point inputs only")

    n, c, h, w = x.shape
    s = int(stride)
    if s == 1:
        return x

    itemsize = jnp.dtype(x.dtype).itemsize
    total_rows = n * c * h

    g = _pick_group(total_rows, w, s, itemsize=itemsize)
    kb = _pick_chunk(w)
    gw = g * w                      # input super-row width
    m = g * s * s * w               # output super-row width (lane dim)
    nrows = total_rows // g

    br = _pick_rows_per_block(nrows, m * itemsize, itemsize)
    grid = (_cdiv(nrows, br),)

    x2 = x.reshape(nrows, gw)       # contiguous reshape (free)

    pad128 = lambda v: _cdiv(v, 128) * 128
    in_blk = br * pad128(gw) * itemsize
    out_blk = br * pad128(m) * itemsize
    # Double-buffered in+out plus slack, clamped to 48 MiB so the request is
    # always inside physical VMEM (v7x: 64 MiB/TC; v5e/v6e: 128 MiB).
    vmem_limit = int(min(48 << 20,
                         max(32 << 20, 3 * (in_blk + out_blk) + (2 << 20))))

    kernel = functools.partial(_unpool_kernel, w=w, stride=s, g=g, kb=kb)

    out2 = pl.pallas_call(
        kernel,
        out_shape=jax.ShapeDtypeStruct((nrows, m), x.dtype),
        grid=grid,
        in_specs=[pl.BlockSpec((br, gw), lambda b: (b, 0))],
        out_specs=pl.BlockSpec((br, m), lambda b: (b, 0)),
        compiler_params=pltpu.CompilerParams(
            dimension_semantics=("parallel",),
            vmem_limit_bytes=vmem_limit,
        ),
    )(x2)

    return out2.reshape(n, c, h * s, w * s)


def unpool_reference(x: jax.Array, stride: int = 2) -> jax.Array:
    """Pure-JAX reference for the conv_transpose2d scatter."""
    n, c, h, w = x.shape
    out = jnp.zeros((n, c, h * stride, w * stride), x.dtype)
    return out.at[:, :, ::stride, ::stride].set(x)


if __name__ == "__main__":
    # Module parameters (deterministic, as in Unpool.__init__):
    num_channels = 4
    stride = 2
    # weights = zeros(C, 1, s, s); weights[:, :, 0, 0] = 1
    weights = np.zeros((num_channels, 1, stride, stride), dtype=np.float32)
    weights[:, :, 0, 0] = 1.0
    # (The kernel encodes this fixed weight analytically as a strided scatter.)

    key = jax.random.PRNGKey(0)
    N, C, H, W = 2, num_channels, 16, 16
    x = jax.random.normal(key, (N, C, H, W), dtype=jnp.float32)

    y = jax.block_until_ready(unpool(x, stride=stride))

    y_ref = unpool_reference(x, stride=stride)
    assert y.shape == (N, C, H * stride, W * stride), y.shape
    np.testing.assert_allclose(np.asarray(y), np.asarray(y_ref), rtol=0, atol=0)

    print("KERNEL_OK")
</pallas_src>

<mosaic_0001>
module attributes {stable_mosaic.version = 11 : i64} {
  func.func @_unpool_kernel(%arg0: i32, %arg1: memref<16x32xf32, #tpu.memory_space<vmem>>, %arg2: memref<16x128xf32, #tpu.memory_space<vmem>>) attributes {dimension_semantics = [#tpu.dimension_semantics<parallel>], iteration_bounds = array<i64: 4>, scalar_prefetch = 0 : i64, scratch_operands = 0 : i64, tpu.core_type = #tpu.core_type<tc>, window_params = [{transform_indices = @transform_0, window_bounds = array<i64: 16, 32>}, {transform_indices = @transform_1, window_bounds = array<i64: 16, 128>}]} {
    %cst = arith.constant 0.000000e+00 : f32
    %0 = vector.broadcast %cst : f32 to vector<16x128xf32>
    %c0 = arith.constant 0 : index
    %c0_0 = arith.constant 0 : index
    %1 = vector.load %arg2[%c0, %c0_0] : memref<16x128xf32, #tpu.memory_space<vmem>>, vector<16x128xf32>
    tpu.vector_store %arg2[%c0, %c0_0], %0 {strides = array<i32>} : memref<16x128xf32, #tpu.memory_space<vmem>>, vector<16x128xf32>,
    %2 = tpu.iota {dimensions = array<i32: 0>} : vector<16x32xi32>
    %3 = tpu.iota {dimensions = array<i32: 1>} : vector<16x32xi32>
    %c2_i32 = arith.constant 2 : i32
    %4 = vector.broadcast %c2_i32 : i32 to vector<16x32xi32>
    %5 = arith.muli %2, %4 : vector<16x32xi32>
    %6 = arith.cmpi eq, %3, %5 : vector<16x32xi32>
    %7 = arith.extui %6 : vector<16x32xi1> to vector<16x32xi32>
    %8 = arith.sitofp %7 : vector<16x32xi32> to vector<16x32xf32>
    %c0_1 = arith.constant 0 : index
    %c0_2 = arith.constant 0 : index
    %9 = vector.load %arg1[%c0_1, %c0_2] : memref<16x32xf32, #tpu.memory_space<vmem>>, vector<16x16xf32>
    %cst_3 = arith.constant dense<0.000000e+00> : vector<16x32xf32>
    %10 = tpu.matmul %9, %8, %cst_3 {dimension_numbers = #tpu.dot_dimension_numbers<[1], [0], [0], [1], [0, 0, 1, 1], [], []>} : vector<16x16xf32>, vector<16x32xf32>, vector<16x32xf32> -> vector<16x32xf32>
    %c0_4 = arith.constant 0 : index
    %c0_5 = arith.constant 0 : index
    %11 = vector.load %arg2[%c0_4, %c0_5] : memref<16x128xf32, #tpu.memory_space<vmem>>, vector<16x32xf32>
    tpu.vector_store %arg2[%c0_4, %c0_5], %10 {strides = array<i32>} : memref<16x128xf32, #tpu.memory_space<vmem>>, vector<16x32xf32>,
    %c0_6 = arith.constant 0 : index
    %c16 = arith.constant 16 : index
    %12 = vector.load %arg1[%c0_6, %c16] : memref<16x32xf32, #tpu.memory_space<vmem>>, vector<16x16xf32>
    %cst_7 = arith.constant dense<0.000000e+00> : vector<16x32xf32>
    %13 = tpu.matmul %12, %8, %cst_7 {dimension_numbers = #tpu.dot_dimension_numbers<[1], [0], [0], [1], [0, 0, 1, 1], [], []>} : vector<16x16xf32>, vector<16x32xf32>, vector<16x32xf32> -> vector<16x32xf32>
    %c0_8 = arith.constant 0 : index
    %c64 = arith.constant 64 : index
    %14 = vector.load %arg2[%c0_8, %c64] : memref<16x128xf32, #tpu.memory_space<vmem>>, vector<16x32xf32>
    tpu.vector_store %arg2[%c0_8, %c64], %13 {strides = array<i32>} : memref<16x128xf32, #tpu.memory_space<vmem>>, vector<16x32xf32>,
    return
  }
  func.func @transform_0(%arg0: i32) -> (i32, i32) {
    %c0_i32 = arith.constant 0 : i32
    %c0_i32_0 = arith.constant 0 : i32
    return %arg0, %c0_i32 : i32, i32
  }
  func.func @transform_1(%arg0: i32) -> (i32, i32) {
    %c0_i32 = arith.constant 0 : i32
    %c0_i32_0 = arith.constant 0 : i32
    return %arg0, %c0_i32 : i32, i32
  }
}

</mosaic_0001>

<llo_original>
// kernel: tpu_custom_call.1
$region0: #{tpu_custom_call.1}
  #allocation0 [shape = 'u32[]', space=smem, size = 0x4, offset = 0x4, fixed_abs, tag = 'smem constant byte address 0x4 - core index']
  #allocation1 [shape = 'u32[144,128]{1,0:T(1,128)}', space=vmem, size = 0x12000, scoped, tag = 'internal scratch']
  %s0 = inlined_call_operand.vmem [shape: f32[64,32], index: 0, kind: input, shape index: {}]
  %s1 = inlined_call_operand.hbm [shape: f32[64,128], index: 1, kind: output, shape index: {}]
  %s2 = sld [smem:[#allocation0]]
  $region37: #{tpu_custom_call.1} parent=0
    _
  %s4 = ssub.s32 1, %s2
  %s5 = scalar_select 0, %s4, %s2
  $region1: #{tpu_custom_call.1} parent=0
    #allocation2 [shape = 'u8[16384]{0}', space=vmem, size = 0x4000, scoped, tag = 'output window, operand 0']
    #allocation3 [shape = 's32[2]{0}', space=sflag, size = 0x8, scoped, tag = 'scoped memory for tpu_custom_call.1']
    %6 = vsyncpa [#allocation3], 0
    %s7 = scalar_lea.sflag [#allocation3], 1
    %8 = vsyncpa %s7, 0
    loop: start=0, step=1, limit=6
    $region2: #{tpu_custom_call.1} parent=1 // loop_pre_header
      _
    $region3: #{tpu_custom_call.1} parent=1 // loop_header
      %s10 = sphi 0, %s14
      %p11 = scmp.ge.s32.totalorder %s10, 6
      %s20 = sphi 0, %s22
      %s23 = sphi 0, %s20
      %s24 = sphi 0, %s23
      %s40 = sphi 0, %s24
      %s46 = sphi 0, %s48
      %s49 = sphi 0, %s46
      %s50 = sphi 0, %s49
      %s66 = sphi 0, %s50
    $region4: #{tpu_custom_call.1} parent=1 // loop_header_branch
      %13 = sbr.rel (%p11) target = $region8
    $region5: #{tpu_custom_call.1} parent=1 // loop_body
      %s15 = ssub.s32 %s10, 1
      %s16 = ssub.s32 %s10, 2
      %s17 = sadd.s32 %s10, 1
      %s18 = ssub.s32 %s10, %s17
      %p19 = scmp.eq.s32.totalorder %s18, 0
      %s21 = sadd.s32 %s20, 1
      %s22 = scalar_select %p19, %s20, %s21
      %p25 = pneg %p19
      %p26 = scmp.eq.s32.totalorder %s10, 3
      %p27 = por %p25, %p26
      %p28 = scmp.ne.s32.totalorder %s20, %s23
      %p29 = scmp.eq.s32.totalorder %s10, 0
      %p30 = por %p28, %p29
      %p31 = scmp.ne.s32.totalorder %s20, %s23
      %p32 = scmp.eq.s32.totalorder %s15, 3
      %p33 = por %p31, %p32
      %p34 = scmp.ne.s32.totalorder %s23, %s24
      %p35 = scmp.eq.s32.totalorder %s15, 0
      %p36 = por %p34, %p35
      %p37 = scmp.ne.s32.totalorder %s23, %s24
      %p38 = scmp.eq.s32.totalorder %s16, 3
      %p39 = por %p37, %p38
      %p41 = scmp.ne.s32.totalorder %s24, %s40
      %p42 = scmp.eq.s32.totalorder %s16, 0
      %p43 = por %p41, %p42
      %s44 = ssub.s32 %s10, %s17
      %p45 = scmp.eq.s32.totalorder %s44, 0
      %s47 = sadd.s32 %s46, 1
      %s48 = scalar_select %p45, %s46, %s47
      %p51 = pneg %p45
      %p52 = scmp.eq.s32.totalorder %s10, 3
      %p53 = por %p51, %p52
      %p54 = scmp.ne.s32.totalorder %s46, %s49
      %p55 = scmp.eq.s32.totalorder %s10, 0
      %p56 = por %p54, %p55
      %p57 = scmp.ne.s32.totalorder %s46, %s49
      %p58 = scmp.eq.s32.totalorder %s15, 3
      %p59 = por %p57, %p58
      %p60 = scmp.ne.s32.totalorder %s49, %s50
      %p61 = scmp.eq.s32.totalorder %s15, 0
      %p62 = por %p60, %p61
      %p63 = scmp.ne.s32.totalorder %s49, %s50
      %p64 = scmp.eq.s32.totalorder %s16, 3
      %p65 = por %p63, %p64
      %p67 = scmp.ne.s32.totalorder %s50, %s66
      %p68 = scmp.eq.s32.totalorder %s16, 0
      %p69 = por %p67, %p68
      %p70 = scmp.le.s32.totalorder 1, %s10
      %p71 = scmp.lt.s32.totalorder %s10, 5
      %p72 = pnand %p70, %p71
      %p73 = pneg %p72
      // Predicated region
      $region9: #{tpu_custom_call.1} parent=5 // pred_check
        _
      $region10: #{tpu_custom_call.1} parent=5 // pred_check_branch
        %75 = sbr.rel (%p72) target = $region12
      $region11: #{tpu_custom_call.1} parent=5 // pred_region
        %s76 = ssub.s32 %s10, 1
      $region12: #{tpu_custom_call.1} parent=5 // pred_fallthru
        _
      %p77 = scmp.lt.s32.totalorder %s10, 4
      // Predicated region
      $region13: #{tpu_custom_call.1} parent=5 // pred_check
        %p78 = pneg %p77
      $region14: #{tpu_custom_call.1} parent=5 // pred_check_branch
        %80 = sbr.rel (%p78) target = $region16
      $region15: #{tpu_custom_call.1} parent=5 // pred_region
        // Predicated region
        $region17: #{tpu_custom_call.1} parent=15 // pred_check
          %p81 = pneg %p30
        $region18: #{tpu_custom_call.1} parent=15 // pred_check_branch
          %83 = sbr.rel (%p81) target = $region20
        $region19: #{tpu_custom_call.1} parent=15 // pred_region
          %s84 = smul.u32 2, %s10
          %p85 = scmp.lt.s32.totalorder %s84, 7
          %s86 = scalar_select %p85, %s84, 7
          %s87 = smul.addr %s86, 8
          %s88 = scalar_lea.vmem %s0, %s87
          %s89 = smul.u32 2, %s10
        $region20: #{tpu_custom_call.1} parent=15 // pred_fallthru
          _
      $region16: #{tpu_custom_call.1} parent=5 // pred_fallthru
        _
      %p90 = scmp.le.s32.totalorder 1, %s10
      %p91 = scmp.lt.s32.totalorder %s10, 5
      %p92 = pnand %p90, %p91
      %p93 = pneg %p92
      // Predicated region
      $region21: #{tpu_custom_call.1} parent=5 // pred_check
        _
      $region22: #{tpu_custom_call.1} parent=5 // pred_check_branch
        %95 = sbr.rel (%p92) target = $region24
      $region23: #{tpu_custom_call.1} parent=5 // pred_region
        %s96 = ssub.s32 %s10, 1
        %s97 = smul.u32 2, %s15
        %p98 = scmp.lt.s32.totalorder %s97, 7
        %s99 = scalar_select %p98, %s97, 7
        %s100 = smul.addr %s99, 8
        %s101 = scalar_lea.vmem %s0, %s100
        %p102 = pneg %p36
        %p103 = pneg %p33
        %p104 = pneg %p62
        %p105 = pneg %p59
        %s106 = sand.u32 %s49, 1
        %s107 = scalar_lea.sflag [#allocation3], %s106
        %s108 = sand.u32 %s49, 1
        %s109 = smul.addr %s108, 16
        %s110 = scalar_lea.vmem [#allocation2], %s109
        %s111 = smul.u32 2, %s15
        %p112 = scmp.lt.s32.totalorder %s111, 7
        %s113 = scalar_select %p112, %s111, 7
        %s114 = smul.addr %s113, 8
        %s115 = scalar_lea.vmem %s0, %s114
        %s116 = smul.u32 2, %s15
        %s117 = smul.u32 2, %s15
        %118 = vst [vmem:[%s110] sm:$0xff] 0.0
        %119 = vst [vmem:[%s110 + $0x8] sm:$0xff] 0.0
        %v120 = vlaneseq
        %v121 = vshrl.u32 %v120, 7
        %v122 = vadd.s32 %v121, 8
        %v123 = vlaneseq
        %v124 = vand.u32 %v123, 127
        %v125 = vmul.u32 %v121, 2
        %v126 = vmul.u32 %v122, 2
        %vm127 = vcmp.eq.s32.totalorder %v124, %v125
        %vm128 = vcmp.eq.s32.totalorder %v124, %v126
        %v129 = vsel %vm127, 1, 0
        %v130 = vsel %vm128, 1, 0
        %v131 = vcvt.s32.f32 %v129
        %v132 = vcvt.s32.f32 %v130
        %v133 = vld [vmem:[%s115] sm:$0xff]
        %v134 = vld [vmem:[%s115 + $0x8] sm:$0xff]
        %vm135 = vcmask 130048
        %v137 = vsel %vm135, %v133, 0
        %v140 = vsel %vm135, %v134, 0
        %142 = vmatprep.subr.mxu0 0.0
        %143 = vmatpush1.msra.mxu0 %v131
        %144 = vmatprep.subr.mxu0 0.0
        %145 = vmatpush1.msra.mxu0 %v132
        %146 = vmatprep.subr.mxu0 0.0
        %147 = vmatpush1.msra.mxu0 0.0
        %148 = vmatprep.subr.mxu0 0.0
        %149 = vmatpush1.msra.mxu0 0.0
        %150 = vmatprep.subr.mxu0 0.0
        %151 = vmatpush1.msra.mxu0 0.0
        %152 = vmatprep.subr.mxu0 0.0
        %153 = vmatpush1.msra.mxu0 0.0
        %154 = vmatprep.subr.mxu0 0.0
        %155 = vmatpush1.msra.mxu0 0.0
        %156 = vmatprep.subr.mxu0 0.0
        %157 = vmatpush1.msra.mxu0 0.0
        %158 = vmatprep.subr.mxu0 0.0
        %159 = vmatpush1.msra.mxu0 0.0
        %160 = vmatprep.subr.mxu0 0.0
        %161 = vmatpush1.msra.mxu0 0.0
        %162 = vmatprep.subr.mxu0 0.0
        %163 = vmatpush1.msra.mxu0 0.0
        %164 = vmatprep.subr.mxu0 0.0
        %165 = vmatpush1.msra.mxu0 0.0
        %166 = vmatprep.subr.mxu0 0.0
        %167 = vmatpush1.msra.mxu0 0.0
        %168 = vmatprep.subr.mxu0 0.0
        %169 = vmatpush1.msra.mxu0 0.0
        %170 = vmatprep.subr.mxu0 0.0
        %171 = vmatpush1.msra.mxu0 0.0
        %172 = vmatprep.subr.mxu0 0.0
        %173 = vmatpush1.msra.mxu0 0.0
        %174 = vmatprep.subr.mxu0 0.0
        %175 = vmatpush1.msra.mxu0 0.0
        %176 = vmatprep.subr.mxu0 0.0
        %177 = vmatpush1.msra.mxu0 0.0
        %178 = vmatprep.subr.mxu0 0.0
        %179 = vmatpush1.msra.mxu0 0.0
        %180 = vmatprep.subr.mxu0 0.0
        %181 = vmatpush1.msra.mxu0 0.0
        %182 = vmatprep.subr.mxu0 0.0
        %183 = vmatpush1.msra.mxu0 0.0
        %184 = vmatprep.subr.mxu0 0.0
        %185 = vmatpush1.msra.mxu0 0.0
        %186 = vmatprep.subr.mxu0 0.0
        %187 = vmatpush1.msra.mxu0 0.0
        %188 = vmatprep.subr.mxu0 0.0
        %189 = vmatpush1.msra.mxu0 0.0
        %190 = vmatprep.subr.mxu0 0.0
        %191 = vmatpush1.msra.mxu0 0.0
        %192 = vmatprep.subr.mxu0 0.0
        %193 = vmatpush1.msra.mxu0 0.0
        %194 = vmatprep.subr.mxu0 0.0
        %195 = vmatpush1.msra.mxu0 0.0
        %196 = vmatprep.subr.mxu0 0.0
        %197 = vmatpush1.msra.mxu0 0.0
        %198 = vmatprep.subr.mxu0 0.0
        %199 = vmatpush1.msra.mxu0 0.0
        %200 = vmatprep.subr.mxu0 0.0
        %201 = vmatpush1.msra.mxu0 0.0
        %202 = vmatprep.subr.mxu0 0.0
        %203 = vmatpush1.msra.mxu0 0.0
        %204 = vmatprep.subr.mxu0 0.0
        %205 = vmatpush1.msra.mxu0 0.0
        %206 = vmatprep.mubr.f32.mxu0 0.0
        %207 = vmatmul.mubr.f32.gmra.mrb[0].mxu0 %v137
        %v208 = vpop.f32.mrb[0].mxu0
        %v209 = vadd.f32 0.0, %v208
        %v210 = vpop.f32.mrb[0].mxu0
        %211 = vmatprep.mubr.f32.mxu0 0.0
        %212 = vmatmul.mubr.f32.gmra.mrb[0].mxu0 %v140
        %v213 = vpop.f32.mrb[0].mxu0
        %v214 = vadd.f32 0.0, %v213
        %v215 = vpop.f32.mrb[0].mxu0
        %216 = vdwg.mxu0
        %vm217 = vcmask 261120
        %218 = vst.msk [vmem:[%s110] sm:$0xff] %vm217, %v209
        %219 = vst.msk [vmem:[%s110 + $0x8] sm:$0xff] %vm217, %v214
        %v220 = vld [vmem:[%s115] sm:$0xff]
        %v221 = vld [vmem:[%s115 + $0x8] sm:$0xff]
        %224 = vrot.lane.b32.xlu0 %v220, 112
        %v225 = vpop.permute.xlu0 %224
        %226 = vrot.lane.b32.xlu0 %v221, 112
        %v227 = vpop.permute.xlu0 %226
        %v228 = vsel %vm135, %v225, 0
        %v230 = vsel %vm135, %v227, 0
        %232 = vmatprep.subr.mxu0 0.0
        %233 = vmatpush1.msra.mxu0 %v131
        %234 = vmatprep.subr.mxu0 0.0
        %235 = vmatpush1.msra.mxu0 %v132
        %236 = vmatprep.subr.mxu0 0.0
        %237 = vmatpush1.msra.mxu0 0.0
        %238 = vmatprep.subr.mxu0 0.0
        %239 = vmatpush1.msra.mxu0 0.0
        %240 = vmatprep.subr.mxu0 0.0
        %241 = vmatpush1.msra.mxu0 0.0
        %242 = vmatprep.subr.mxu0 0.0
        %243 = vmatpush1.msra.mxu0 0.0
        %244 = vmatprep.subr.mxu0 0.0
        %245 = vmatpush1.msra.mxu0 0.0
        %246 = vmatprep.subr.mxu0 0.0
        %247 = vmatpush1.msra.mxu0 0.0
        %248 = vmatprep.subr.mxu0 0.0
        %249 = vmatpush1.msra.mxu0 0.0
        %250 = vmatprep.subr.mxu0 0.0
        %251 = vmatpush1.msra.mxu0 0.0
        %252 = vmatprep.subr.mxu0 0.0
        %253 = vmatpush1.msra.mxu0 0.0
        %254 = vmatprep.subr.mxu0 0.0
        %255 = vmatpush1.msra.mxu0 0.0
        %256 = vmatprep.subr.mxu0 0.0
        %257 = vmatpush1.msra.mxu0 0.0
        %258 = vmatprep.subr.mxu0 0.0
        %259 = vmatpush1.msra.mxu0 0.0
        %260 = vmatprep.subr.mxu0 0.0
        %261 = vmatpush1.msra.mxu0 0.0
        %262 = vmatprep.subr.mxu0 0.0
        %263 = vmatpush1.msra.mxu0 0.0
        %264 = vmatprep.subr.mxu0 0.0
        %265 = vmatpush1.msra.mxu0 0.0
        %266 = vmatprep.subr.mxu0 0.0
        %267 = vmatpush1.msra.mxu0 0.0
        %268 = vmatprep.subr.mxu0 0.0
        %269 = vmatpush1.msra.mxu0 0.0
        %270 = vmatprep.subr.mxu0 0.0
        %271 = vmatpush1.msra.mxu0 0.0
        %272 = vmatprep.subr.mxu0 0.0
        %273 = vmatpush1.msra.mxu0 0.0
        %274 = vmatprep.subr.mxu0 0.0
        %275 = vmatpush1.msra.mxu0 0.0
        %276 = vmatprep.subr.mxu0 0.0
        %277 = vmatpush1.msra.mxu0 0.0
        %278 = vmatprep.subr.mxu0 0.0
        %279 = vmatpush1.msra.mxu0 0.0
        %280 = vmatprep.subr.mxu0 0.0
        %281 = vmatpush1.msra.mxu0 0.0
        %282 = vmatprep.subr.mxu0 0.0
        %283 = vmatpush1.msra.mxu0 0.0
        %284 = vmatprep.subr.mxu0 0.0
        %285 = vmatpush1.msra.mxu0 0.0
        %286 = vmatprep.subr.mxu0 0.0
        %287 = vmatpush1.msra.mxu0 0.0
        %288 = vmatprep.subr.mxu0 0.0
        %289 = vmatpush1.msra.mxu0 0.0
        %290 = vmatprep.subr.mxu0 0.0
        %291 = vmatpush1.msra.mxu0 0.0
        %292 = vmatprep.subr.mxu0 0.0
        %293 = vmatpush1.msra.mxu0 0.0
        %294 = vmatprep.subr.mxu0 0.0
        %295 = vmatpush1.msra.mxu0 0.0
        %296 = vmatprep.mubr.f32.mxu0 0.0
        %297 = vmatmul.mubr.f32.gmra.mrb[0].mxu0 %v228
        %v298 = vpop.f32.mrb[0].mxu0
        %v299 = vadd.f32 0.0, %v298
        %v300 = vpop.f32.mrb[0].mxu0
        %301 = vmatprep.mubr.f32.mxu0 0.0
        %302 = vmatmul.mubr.f32.gmra.mrb[0].mxu0 %v230
        %v303 = vpop.f32.mrb[0].mxu0
        %v304 = vadd.f32 0.0, %v303
        %v305 = vpop.f32.mrb[0].mxu0
        %306 = vdwg.mxu0
        %309 = vrot.lane.b32.xlu0 %v299, 64
        %v310 = vpop.permute.xlu0 %309
        %311 = vrot.lane.b32.xlu0 %v304, 64
        %v312 = vpop.permute.xlu0 %311
        %vm315 = vcmask 785920
        %316 = vst.msk [vmem:[%s110] sm:$0xff] %vm315, %v310
        %317 = vst.msk [vmem:[%s110 + $0x8] sm:$0xff] %vm315, %v312
        %s318 = sand.u32 %s49, 1
        %s319 = scalar_lea.sflag [#allocation3], %s318
        %s320 = sand.u32 %s49, 1
        %s321 = smul.addr %s320, 16
        %s322 = scalar_lea.vmem [#allocation2], %s321
        // Predicated region
        $region25: #{tpu_custom_call.1} parent=23 // pred_check
          %p323 = pneg %p59
        $region26: #{tpu_custom_call.1} parent=23 // pred_check_branch
          %325 = sbr.rel (%p323) target = $region28
        $region27: #{tpu_custom_call.1} parent=23 // pred_region
          %s326 = smul.u32 2, %s15
          %s328 = ssub.s32 256, 256
          %329 = vsyncadd %s319, %s328
          %s330 = smul.addr %s326, 128
          %s331 = scalar_lea.hbm %s1, %s330
          %s332 = sshll.u32 %s322, 4
          %s333 = int_to_ptr.vmem [resolvable:$true] %s332
          %338 = dma.vmem_to_hbm [thread:$0]  %s333, 256, %s331, %s319, 128, 128, 8
        $region28: #{tpu_custom_call.1} parent=23 // pred_fallthru
          _
      $region24: #{tpu_custom_call.1} parent=5 // pred_fallthru
        _
      %p339 = scmp.le.s32.totalorder 2, %s10
      // Predicated region
      $region29: #{tpu_custom_call.1} parent=5 // pred_check
        %p340 = pneg %p339
      $region30: #{tpu_custom_call.1} parent=5 // pred_check_branch
        %342 = sbr.rel (%p340) target = $region32
      $region31: #{tpu_custom_call.1} parent=5 // pred_region
        %s343 = ssub.s32 %s10, 2
        // Predicated region
        $region33: #{tpu_custom_call.1} parent=31 // pred_check
          %p344 = pneg %p65
        $region34: #{tpu_custom_call.1} parent=31 // pred_check_branch
          %346 = sbr.rel (%p344) target = $region36
        $region35: #{tpu_custom_call.1} parent=31 // pred_region
          %s347 = sand.u32 %s50, 1
          %s348 = scalar_lea.sflag [#allocation3], %s347
          %s349 = sand.u32 %s50, 1
          %s350 = smul.addr %s349, 16
          %s351 = scalar_lea.vmem [#allocation2], %s350
          %352 = dma.done %s348, 256
        $region36: #{tpu_custom_call.1} parent=31 // pred_fallthru
          _
      $region32: #{tpu_custom_call.1} parent=5 // pred_fallthru
        _
    $region6: #{tpu_custom_call.1} parent=1 // loop_footer
      %s14 = sadd.s32 1, %s10
    $region7: #{tpu_custom_call.1} parent=1 // loop_footer_branch
      %9 = sbr.rel target = $region3
    $region8: #{tpu_custom_call.1} parent=1 // loop_exit
      _
    %353 = vsyncpa [#allocation3], 1
    %s354 = scalar_lea.sflag [#allocation3], 1
    %355 = vsyncpa %s354, 1

</llo_original>
